<compile_context>
chip_gen: v7x
topology: tpu7x:2x2x1
jax: 0.10.0
libtpu: 0.0.40
codegen_flags: <defaults>
</compile_context>

<pallas_src>
import functools

import jax
import jax.numpy as jnp
from jax.experimental import pallas as pl
from jax.experimental.pallas import tpu as pltpu

HID = 10      # hidden width of the MLP (fixed by the PyTorch module)
LANES = 128   # f32 vreg lane count / slab lane width


def _ru(n, m):
    return ((n + m - 1) // m) * m


def _slab_layout():
    """Row offsets of each (transposed) parameter inside the packed slab."""
    offs = {}
    r = 0
    offs["w1"] = r; r += _ru(HID, 8)   # W1^T: (10, state_dim)
    offs["w2"] = r; r += _ru(HID, 8)   # W2^T: (10, 10)
    offs["w3"] = r; r += _ru(HID, 8)   # W3^T: (10, 10)
    offs["w4"] = r; r += 8             # W4^T: (1, 10) row
    offs["b1"] = r; r += _ru(HID, 8)   # b1 as a (10, 1) column
    offs["b2"] = r; r += _ru(HID, 8)
    offs["b3"] = r; r += _ru(HID, 8)
    offs["b4"] = r; r += 8             # (1, 1)
    return offs, r


def pack_params(params, compute_dtype=jnp.float32):
    """Pack transposed weights/biases into one (rows, 128) slab (single DMA).

    Build this ONCE per parameter set and reuse it across forward calls.
    """
    state_dim = params["w1"].shape[0]
    if state_dim > LANES:
        # TODO(synk): tile W1^T across multiple lane blocks for state_dim > 128.
        raise ValueError(f"state_dim={state_dim} > {LANES} not supported by this slab layout")
    offs, rows = _slab_layout()
    slab = jnp.zeros((rows, LANES), jnp.float32)
    slab = slab.at[offs["w1"]:offs["w1"] + HID, :state_dim].set(params["w1"].T)
    slab = slab.at[offs["w2"]:offs["w2"] + HID, :HID].set(params["w2"].T)
    slab = slab.at[offs["w3"]:offs["w3"] + HID, :HID].set(params["w3"].T)
    slab = slab.at[offs["w4"], :HID].set(params["w4"][:, 0])        # (10,1) -> row = W4^T
    slab = slab.at[offs["b1"]:offs["b1"] + HID, 0].set(params["b1"][0])
    slab = slab.at[offs["b2"]:offs["b2"] + HID, 0].set(params["b2"][0])
    slab = slab.at[offs["b3"]:offs["b3"] + HID, 0].set(params["b3"][0])
    slab = slab.at[offs["b4"], 0].set(params["b4"][0, 0])
    return slab.astype(compute_dtype)


def value_net_kernel(x_ref, p_ref, o_ref):
    state_dim = x_ref.shape[0]
    offs, _ = _slab_layout()
    cdt = x_ref.dtype  # compute dtype fed to the MXU (f32 or bf16)

    # Static slices of the resident parameter slab (no HBM traffic per step).
    w1 = p_ref[offs["w1"]:offs["w1"] + HID, 0:state_dim]   # (10, state_dim)
    w2 = p_ref[offs["w2"]:offs["w2"] + HID, 0:HID]         # (10, 10)
    w3 = p_ref[offs["w3"]:offs["w3"] + HID, 0:HID]         # (10, 10)
    w4 = p_ref[offs["w4"]:offs["w4"] + 1, 0:HID]           # (1, 10)
    b1 = p_ref[offs["b1"]:offs["b1"] + HID, 0:1]           # (10, 1) -> broadcasts over lanes
    b2 = p_ref[offs["b2"]:offs["b2"] + HID, 0:1]
    b3 = p_ref[offs["b3"]:offs["b3"] + HID, 0:1]
    b4 = p_ref[offs["b4"]:offs["b4"] + 1, 0:1]             # (1, 1)

    def layer(w, h, b):
        y = jnp.dot(w, h, preferred_element_type=jnp.float32)
        return y + b.astype(jnp.float32)

    xT = x_ref[...]                                         # (state_dim, bt), batch on lanes
    h = jnp.maximum(layer(w1, xT, b1), 0.0).astype(cdt)     # (10, bt)
    h = jnp.maximum(layer(w2, h, b2), 0.0).astype(cdt)      # (10, bt)
    h = jnp.maximum(layer(w3, h, b3), 0.0).astype(cdt)      # (10, bt)
    out = layer(w4, h, b4)                                  # (1, bt), lane-dense
    o_ref[...] = out.astype(o_ref.dtype)


@functools.partial(jax.jit, static_argnames=("b_tile",))
def value_network_forward(x, slab, b_tile=2048):
    """x: (batch, state_dim) float32. slab: pre-packed parameter slab."""
    batch, state_dim = x.shape

    # Lane-aligned batch tile (multiple of 128), capped by the padded batch.
    padded_min = _ru(batch, LANES)
    bt = _ru(min(b_tile, padded_min), LANES)
    if padded_min >= 2 * LANES:
        # Give the v7x megacore at least 2 "parallel" grid steps when possible.
        bt = min(bt, (padded_min // 2) // LANES * LANES)
    padded = pl.cdiv(batch, bt) * bt

    # Feature-major (batch-on-lanes) input; zero-pad tail columns (sliced off below).
    xT = x.astype(slab.dtype).T
    if padded != batch:
        xT = jnp.pad(xT, ((0, 0), (0, padded - batch)))

    out = pl.pallas_call(
        value_net_kernel,
        out_shape=jax.ShapeDtypeStruct((1, padded), jnp.float32),
        grid=(padded // bt,),
        in_specs=[
            pl.BlockSpec((state_dim, bt), lambda i: (0, i)),   # streamed batch tiles (lane-dense)
            pl.BlockSpec(slab.shape, lambda i: (0, 0)),        # resident param slab
        ],
        out_specs=pl.BlockSpec((1, bt), lambda i: (0, i)),     # lane-dense output block
        compiler_params=pltpu.CompilerParams(
            dimension_semantics=("parallel",)),
    )(xT, slab)
    return out[0, :batch].reshape(batch, 1)


def init_params(key, state_dimension):
    """Deterministic init mimicking PyTorch nn.Linear default (U[-1/sqrt(fan_in), +])."""
    dims = [(state_dimension, HID), (HID, HID), (HID, HID), (HID, 1)]
    params = {}
    for i, (fan_in, fan_out) in enumerate(dims, start=1):
        key, kw, kb = jax.random.split(key, 3)
        bound = 1.0 / jnp.sqrt(jnp.float32(fan_in))
        params[f"w{i}"] = jax.random.uniform(
            kw, (fan_in, fan_out), jnp.float32, minval=-bound, maxval=bound)
        params[f"b{i}"] = jax.random.uniform(
            kb, (1, fan_out), jnp.float32, minval=-bound, maxval=bound)
    return params


def reference_forward(x, params):
    h = jnp.maximum(x @ params["w1"] + params["b1"], 0.0)
    h = jnp.maximum(h @ params["w2"] + params["b2"], 0.0)
    h = jnp.maximum(h @ params["w3"] + params["b3"], 0.0)
    return h @ params["w4"] + params["b4"]


if __name__ == "__main__":
    key = jax.random.PRNGKey(0)
    state_dimension = 32
    params = init_params(key, state_dimension)

    # Pack parameters ONCE (hoisted out of the per-call hot path) and reuse.
    slab_f32 = pack_params(params, jnp.float32)

    # Case 1: tiny batch (matches the original example), single grid step.
    key, kx = jax.random.split(key)
    x_small = jax.random.normal(kx, (8, state_dimension), jnp.float32)
    out_small = jax.block_until_ready(value_network_forward(x_small, slab_f32))
    ref_small = reference_forward(x_small, params)
    assert out_small.shape == (8, 1)
    assert jnp.allclose(out_small, ref_small, atol=1e-5, rtol=1e-5)

    # Case 2: non-multiple batch -> multi-step "parallel" grid + tail padding.
    key, kx2 = jax.random.split(key)
    x_big = jax.random.normal(kx2, (200, state_dimension), jnp.float32)
    out_big = jax.block_until_ready(value_network_forward(x_big, slab_f32))
    ref_big = reference_forward(x_big, params)
    assert out_big.shape == (200, 1)
    assert jnp.allclose(out_big, ref_big, atol=1e-5, rtol=1e-5)

    # Case 3: bf16 compute path (bf16 MXU inputs, f32 accumulation) for v6e/v7x.
    slab_bf16 = pack_params(params, jnp.bfloat16)
    out_bf16 = jax.block_until_ready(value_network_forward(x_big, slab_bf16))
    assert out_bf16.shape == (200, 1)
    assert jnp.allclose(out_bf16, ref_big, atol=5e-2, rtol=5e-2)

    print("KERNEL_OK")
</pallas_src>

<mosaic_0001>
module attributes {stable_mosaic.version = 11 : i64} {
  func.func @value_net_kernel(%arg0: i32, %arg1: memref<32x128xf32, #tpu.memory_space<vmem>>, %arg2: memref<112x128xf32, #tpu.memory_space<vmem>>, %arg3: memref<1x128xf32, #tpu.memory_space<vmem>>) attributes {dimension_semantics = [#tpu.dimension_semantics<parallel>], iteration_bounds = array<i64: 1>, scalar_prefetch = 0 : i64, scratch_operands = 0 : i64, tpu.core_type = #tpu.core_type<tc>, window_params = [{transform_indices = @transform_0, window_bounds = array<i64: 32, 128>}, {pipeline_mode = #tpu.pipeline_mode<synchronous>, transform_indices = @transform_1, window_bounds = array<i64: 112, 128>}, {transform_indices = @transform_2, window_bounds = array<i64: 1, 128>}]} {
    %c0 = arith.constant 0 : index
    %c0_0 = arith.constant 0 : index
    %0 = vector.load %arg2[%c0, %c0_0] : memref<112x128xf32, #tpu.memory_space<vmem>>, vector<10x32xf32>
    %c16 = arith.constant 16 : index
    %c0_1 = arith.constant 0 : index
    %1 = vector.load %arg2[%c16, %c0_1] : memref<112x128xf32, #tpu.memory_space<vmem>>, vector<10x10xf32>
    %c32 = arith.constant 32 : index
    %c0_2 = arith.constant 0 : index
    %2 = vector.load %arg2[%c32, %c0_2] : memref<112x128xf32, #tpu.memory_space<vmem>>, vector<10x10xf32>
    %c48 = arith.constant 48 : index
    %c0_3 = arith.constant 0 : index
    %3 = vector.load %arg2[%c48, %c0_3] : memref<112x128xf32, #tpu.memory_space<vmem>>, vector<1x10xf32>
    %c56 = arith.constant 56 : index
    %c0_4 = arith.constant 0 : index
    %4 = vector.load %arg2[%c56, %c0_4] : memref<112x128xf32, #tpu.memory_space<vmem>>, vector<10x1xf32>
    %c72 = arith.constant 72 : index
    %c0_5 = arith.constant 0 : index
    %5 = vector.load %arg2[%c72, %c0_5] : memref<112x128xf32, #tpu.memory_space<vmem>>, vector<10x1xf32>
    %c88 = arith.constant 88 : index
    %c0_6 = arith.constant 0 : index
    %6 = vector.load %arg2[%c88, %c0_6] : memref<112x128xf32, #tpu.memory_space<vmem>>, vector<10x1xf32>
    %c104 = arith.constant 104 : index
    %c0_7 = arith.constant 0 : index
    %7 = vector.load %arg2[%c104, %c0_7] : memref<112x128xf32, #tpu.memory_space<vmem>>, vector<1x1xf32>
    %c0_8 = arith.constant 0 : index
    %c0_9 = arith.constant 0 : index
    %8 = vector.load %arg1[%c0_8, %c0_9] : memref<32x128xf32, #tpu.memory_space<vmem>>, vector<32x128xf32>
    %cst = arith.constant dense<0.000000e+00> : vector<10x128xf32>
    %9 = tpu.matmul %0, %8, %cst {dimension_numbers = #tpu.dot_dimension_numbers<[1], [0], [0], [1], [0, 0, 1, 1], [], []>} : vector<10x32xf32>, vector<32x128xf32>, vector<10x128xf32> -> vector<10x128xf32>
    %10 = vector.broadcast %4 : vector<10x1xf32> to vector<10x128xf32>
    %11 = arith.addf %9, %10 : vector<10x128xf32>
    %cst_10 = arith.constant 0.000000e+00 : f32
    %12 = vector.broadcast %cst_10 : f32 to vector<10x128xf32>
    %13 = arith.maximumf %11, %12 : vector<10x128xf32>
    %cst_11 = arith.constant dense<0.000000e+00> : vector<10x128xf32>
    %14 = tpu.matmul %1, %13, %cst_11 {dimension_numbers = #tpu.dot_dimension_numbers<[1], [0], [0], [1], [0, 0, 1, 1], [], []>} : vector<10x10xf32>, vector<10x128xf32>, vector<10x128xf32> -> vector<10x128xf32>
    %15 = vector.broadcast %5 : vector<10x1xf32> to vector<10x128xf32>
    %16 = arith.addf %14, %15 : vector<10x128xf32>
    %cst_12 = arith.constant 0.000000e+00 : f32
    %17 = vector.broadcast %cst_12 : f32 to vector<10x128xf32>
    %18 = arith.maximumf %16, %17 : vector<10x128xf32>
    %cst_13 = arith.constant dense<0.000000e+00> : vector<10x128xf32>
    %19 = tpu.matmul %2, %18, %cst_13 {dimension_numbers = #tpu.dot_dimension_numbers<[1], [0], [0], [1], [0, 0, 1, 1], [], []>} : vector<10x10xf32>, vector<10x128xf32>, vector<10x128xf32> -> vector<10x128xf32>
    %20 = vector.broadcast %6 : vector<10x1xf32> to vector<10x128xf32>
    %21 = arith.addf %19, %20 : vector<10x128xf32>
    %cst_14 = arith.constant 0.000000e+00 : f32
    %22 = vector.broadcast %cst_14 : f32 to vector<10x128xf32>
    %23 = arith.maximumf %21, %22 : vector<10x128xf32>
    %cst_15 = arith.constant dense<0.000000e+00> : vector<1x128xf32>
    %24 = tpu.matmul %3, %23, %cst_15 {dimension_numbers = #tpu.dot_dimension_numbers<[1], [0], [0], [1], [0, 0, 1, 1], [], []>} : vector<1x10xf32>, vector<10x128xf32>, vector<1x128xf32> -> vector<1x128xf32>
    %25 = vector.broadcast %7 : vector<1x1xf32> to vector<1x128xf32>
    %26 = arith.addf %24, %25 : vector<1x128xf32>
    %c0_16 = arith.constant 0 : index
    %c0_17 = arith.constant 0 : index
    %27 = vector.load %arg3[%c0_16, %c0_17] : memref<1x128xf32, #tpu.memory_space<vmem>>, vector<1x128xf32>
    tpu.vector_store %arg3[%c0_16, %c0_17], %26 {strides = array<i32>} : memref<1x128xf32, #tpu.memory_space<vmem>>, vector<1x128xf32>,
    return
  }
  func.func @transform_0(%arg0: i32) -> (i32, i32) {
    %c0_i32 = arith.constant 0 : i32
    %c0_i32_0 = arith.constant 0 : i32
    return %c0_i32, %arg0 : i32, i32
  }
  func.func @transform_1(%arg0: i32) -> (i32, i32) {
    %c0_i32 = arith.constant 0 : i32
    %c0_i32_0 = arith.constant 0 : i32
    %c0_i32_1 = arith.constant 0 : i32
    return %c0_i32, %c0_i32_0 : i32, i32
  }
  func.func @transform_2(%arg0: i32) -> (i32, i32) {
    %c0_i32 = arith.constant 0 : i32
    %c0_i32_0 = arith.constant 0 : i32
    return %c0_i32, %arg0 : i32, i32
  }
}

</mosaic_0001>

<llo_original>
// kernel: value_network_forward.1
$region0: #{value_network_forward.1}
  #allocation0 [shape = 'u32[]', space=smem, size = 0x4, offset = 0x4, fixed_abs, tag = 'smem constant byte address 0x4 - core index']
  #allocation1 [shape = 'u32[144,128]{1,0:T(1,128)}', space=vmem, size = 0x12000, scoped, tag = 'internal scratch']
  %s0 = inlined_call_operand.vmem [shape: f32[32,128], index: 0, kind: input, shape index: {}]
  %s1 = inlined_call_operand.vmem [shape: f32[112,128], index: 1, kind: input, shape index: {}]
  %s2 = inlined_call_operand.vmem [shape: f32[1,128], index: 2, kind: output, shape index: {}]
  %s3 = sld [smem:[#allocation0]]
  $region18: #{value_network_forward.1} parent=0
    _
  %s5 = ssub.s32 1, %s3
  %s6 = scalar_select 0, %s5, %s3
  // Predicated region
  $region2: #{value_network_forward.1} parent=0 // pred_check
    _
  $region3: #{value_network_forward.1} parent=0 // pred_check_branch
    %8 = sbr.rel (0) target = $region5
  $region4: #{value_network_forward.1} parent=0 // pred_region
    _
  $region5: #{value_network_forward.1} parent=0 // pred_fallthru
    _
  // Predicated region
  $region6: #{value_network_forward.1} parent=0 // pred_check
    _
  $region7: #{value_network_forward.1} parent=0 // pred_check_branch
    %10 = sbr.rel (0) target = $region9
  $region8: #{value_network_forward.1} parent=0 // pred_region
    _
  $region9: #{value_network_forward.1} parent=0 // pred_fallthru
    _
  %v11 = vld [vmem:[%s1] sm:$0xff]
  %v12 = vld [vmem:[%s1 + $0x8] sm:$0x3]
  %v13 = vld [vmem:[%s1 + $0x10] sm:$0xff]
  %v14 = vld [vmem:[%s1 + $0x18] sm:$0x3]
  %v15 = vld [vmem:[%s1 + $0x20] sm:$0xff]
  %v16 = vld [vmem:[%s1 + $0x28] sm:$0x3]
  %v17 = vld [vmem:[%s1 + $0x30] sm:$0x1]
  %v18 = vld [vmem:[%s1 + $0x38] sm:$0xff]
  %v19 = vld [vmem:[%s1 + $0x40] sm:$0x3]
  %v20 = vld [vmem:[%s1 + $0x48] sm:$0xff]
  %v21 = vld [vmem:[%s1 + $0x50] sm:$0x3]
  %v22 = vld [vmem:[%s1 + $0x58] sm:$0xff]
  %v23 = vld [vmem:[%s1 + $0x60] sm:$0x3]
  %v24 = vld [vmem:[%s1 + $0x68] sm:$0x1]
  %v25 = vld [vmem:[%s0] sm:$0xff]
  %v26 = vld [vmem:[%s0 + $0x8] sm:$0xff]
  %v27 = vld [vmem:[%s0 + $0x10] sm:$0xff]
  %v28 = vld [vmem:[%s0 + $0x18] sm:$0xff]
  %30 = vset.pattern.permute.xlu0 0
  %31 = vperm.xlu0 %30, %v18
  %v32 = vpop.permute.xlu0 %31
  %35 = vset.pattern.permute.xlu0 0
  %36 = vperm.xlu0 %35, %v19
  %v37 = vpop.permute.xlu0 %36
  %vm39 = vcmask 261120
  %v41 = vsel %vm39, %v11, 0
  %v44 = vsel %vm39, %v12, 0
  %46 = vmatprep.subr.mxu0 0.0
  %47 = vmatpush1.msra.mxu0 %v25
  %48 = vmatprep.subr.mxu0 0.0
  %49 = vmatpush1.msra.mxu0 %v26
  %50 = vmatprep.subr.mxu0 0.0
  %51 = vmatpush1.msra.mxu0 %v27
  %52 = vmatprep.subr.mxu0 0.0
  %53 = vmatpush1.msra.mxu0 %v28
  %54 = vmatprep.subr.mxu0 0.0
  %55 = vmatpush1.msra.mxu0 0.0
  %56 = vmatprep.subr.mxu0 0.0
  %57 = vmatpush1.msra.mxu0 0.0
  %58 = vmatprep.subr.mxu0 0.0
  %59 = vmatpush1.msra.mxu0 0.0
  %60 = vmatprep.subr.mxu0 0.0
  %61 = vmatpush1.msra.mxu0 0.0
  %62 = vmatprep.subr.mxu0 0.0
  %63 = vmatpush1.msra.mxu0 0.0
  %64 = vmatprep.subr.mxu0 0.0
  %65 = vmatpush1.msra.mxu0 0.0
  %66 = vmatprep.subr.mxu0 0.0
  %67 = vmatpush1.msra.mxu0 0.0
  %68 = vmatprep.subr.mxu0 0.0
  %69 = vmatpush1.msra.mxu0 0.0
  %70 = vmatprep.subr.mxu0 0.0
  %71 = vmatpush1.msra.mxu0 0.0
  %72 = vmatprep.subr.mxu0 0.0
  %73 = vmatpush1.msra.mxu0 0.0
  %74 = vmatprep.subr.mxu0 0.0
  %75 = vmatpush1.msra.mxu0 0.0
  %76 = vmatprep.subr.mxu0 0.0
  %77 = vmatpush1.msra.mxu0 0.0
  %78 = vmatprep.subr.mxu0 0.0
  %79 = vmatpush1.msra.mxu0 0.0
  %80 = vmatprep.subr.mxu0 0.0
  %81 = vmatpush1.msra.mxu0 0.0
  %82 = vmatprep.subr.mxu0 0.0
  %83 = vmatpush1.msra.mxu0 0.0
  %84 = vmatprep.subr.mxu0 0.0
  %85 = vmatpush1.msra.mxu0 0.0
  %86 = vmatprep.subr.mxu0 0.0
  %87 = vmatpush1.msra.mxu0 0.0
  %88 = vmatprep.subr.mxu0 0.0
  %89 = vmatpush1.msra.mxu0 0.0
  %90 = vmatprep.subr.mxu0 0.0
  %91 = vmatpush1.msra.mxu0 0.0
  %92 = vmatprep.subr.mxu0 0.0
  %93 = vmatpush1.msra.mxu0 0.0
  %94 = vmatprep.subr.mxu0 0.0
  %95 = vmatpush1.msra.mxu0 0.0
  %96 = vmatprep.subr.mxu0 0.0
  %97 = vmatpush1.msra.mxu0 0.0
  %98 = vmatprep.subr.mxu0 0.0
  %99 = vmatpush1.msra.mxu0 0.0
  %100 = vmatprep.subr.mxu0 0.0
  %101 = vmatpush1.msra.mxu0 0.0
  %102 = vmatprep.subr.mxu0 0.0
  %103 = vmatpush1.msra.mxu0 0.0
  %104 = vmatprep.subr.mxu0 0.0
  %105 = vmatpush1.msra.mxu0 0.0
  %106 = vmatprep.subr.mxu0 0.0
  %107 = vmatpush1.msra.mxu0 0.0
  %108 = vmatprep.subr.mxu0 0.0
  %109 = vmatpush1.msra.mxu0 0.0
  %110 = vmatprep.mubr.f32.mxu0 0.0
  %111 = vmatmul.mubr.f32.gmra.mrb[0].mxu0 %v41
  %v112 = vpop.f32.mrb[0].mxu0
  %v113 = vadd.f32 %v32, %v112
  %v114 = vpop.f32.mrb[0].mxu0
  %115 = vmatprep.mubr.f32.mxu0 0.0
  %116 = vmatmul.mubr.f32.gmra.mrb[0].mxu0 %v44
  %v117 = vpop.f32.mrb[0].mxu0
  %v118 = vadd.f32 %v37, %v117
  %v119 = vpop.f32.mrb[0].mxu0
  %120 = vdwg.mxu0
  %v121 = vmax.f32 %v113, 0.0
  %v122 = vmax.f32 %v118, 0.0
  %124 = vset.pattern.permute.xlu0 0
  %125 = vperm.xlu0 %124, %v20
  %v126 = vpop.permute.xlu0 %125
  %129 = vset.pattern.permute.xlu0 0
  %130 = vperm.xlu0 %129, %v21
  %v131 = vpop.permute.xlu0 %130
  %vm133 = vcmask 80896
  %v135 = vsel %vm133, %v13, 0
  %v138 = vsel %vm133, %v14, 0
  %vm140 = vcmask 1041408
  %v142 = vsel %vm140, %v122, 0
  %144 = vmatprep.subr.mxu0 0.0
  %145 = vmatpush1.msra.mxu0 %v121
  %146 = vmatprep.subr.mxu0 0.0
  %147 = vmatpush1.msra.mxu0 %v142
  %148 = vmatprep.subr.mxu0 0.0
  %149 = vmatpush1.msra.mxu0 0.0
  %150 = vmatprep.subr.mxu0 0.0
  %151 = vmatpush1.msra.mxu0 0.0
  %152 = vmatprep.subr.mxu0 0.0
  %153 = vmatpush1.msra.mxu0 0.0
  %154 = vmatprep.subr.mxu0 0.0
  %155 = vmatpush1.msra.mxu0 0.0
  %156 = vmatprep.subr.mxu0 0.0
  %157 = vmatpush1.msra.mxu0 0.0
  %158 = vmatprep.subr.mxu0 0.0
  %159 = vmatpush1.msra.mxu0 0.0
  %160 = vmatprep.subr.mxu0 0.0
  %161 = vmatpush1.msra.mxu0 0.0
  %162 = vmatprep.subr.mxu0 0.0
  %163 = vmatpush1.msra.mxu0 0.0
  %164 = vmatprep.subr.mxu0 0.0
  %165 = vmatpush1.msra.mxu0 0.0
  %166 = vmatprep.subr.mxu0 0.0
  %167 = vmatpush1.msra.mxu0 0.0
  %168 = vmatprep.subr.mxu0 0.0
  %169 = vmatpush1.msra.mxu0 0.0
  %170 = vmatprep.subr.mxu0 0.0
  %171 = vmatpush1.msra.mxu0 0.0
  %172 = vmatprep.subr.mxu0 0.0
  %173 = vmatpush1.msra.mxu0 0.0
  %174 = vmatprep.subr.mxu0 0.0
  %175 = vmatpush1.msra.mxu0 0.0
  %176 = vmatprep.subr.mxu0 0.0
  %177 = vmatpush1.msra.mxu0 0.0
  %178 = vmatprep.subr.mxu0 0.0
  %179 = vmatpush1.msra.mxu0 0.0
  %180 = vmatprep.subr.mxu0 0.0
  %181 = vmatpush1.msra.mxu0 0.0
  %182 = vmatprep.subr.mxu0 0.0
  %183 = vmatpush1.msra.mxu0 0.0
  %184 = vmatprep.subr.mxu0 0.0
  %185 = vmatpush1.msra.mxu0 0.0
  %186 = vmatprep.subr.mxu0 0.0
  %187 = vmatpush1.msra.mxu0 0.0
  %188 = vmatprep.subr.mxu0 0.0
  %189 = vmatpush1.msra.mxu0 0.0
  %190 = vmatprep.subr.mxu0 0.0
  %191 = vmatpush1.msra.mxu0 0.0
  %192 = vmatprep.subr.mxu0 0.0
  %193 = vmatpush1.msra.mxu0 0.0
  %194 = vmatprep.subr.mxu0 0.0
  %195 = vmatpush1.msra.mxu0 0.0
  %196 = vmatprep.subr.mxu0 0.0
  %197 = vmatpush1.msra.mxu0 0.0
  %198 = vmatprep.subr.mxu0 0.0
  %199 = vmatpush1.msra.mxu0 0.0
  %200 = vmatprep.subr.mxu0 0.0
  %201 = vmatpush1.msra.mxu0 0.0
  %202 = vmatprep.subr.mxu0 0.0
  %203 = vmatpush1.msra.mxu0 0.0
  %204 = vmatprep.subr.mxu0 0.0
  %205 = vmatpush1.msra.mxu0 0.0
  %206 = vmatprep.subr.mxu0 0.0
  %207 = vmatpush1.msra.mxu0 0.0
  %208 = vmatprep.mubr.f32.mxu0 0.0
  %209 = vmatmul.mubr.f32.gmra.mrb[0].mxu0 %v135
  %v210 = vpop.f32.mrb[0].mxu0
  %v211 = vadd.f32 %v126, %v210
  %v212 = vpop.f32.mrb[0].mxu0
  %213 = vmatprep.mubr.f32.mxu0 0.0
  %214 = vmatmul.mubr.f32.gmra.mrb[0].mxu0 %v138
  %v215 = vpop.f32.mrb[0].mxu0
  %v216 = vadd.f32 %v131, %v215
  %v217 = vpop.f32.mrb[0].mxu0
  %218 = vdwg.mxu0
  %v219 = vmax.f32 %v211, 0.0
  %v220 = vmax.f32 %v216, 0.0
  %222 = vset.pattern.permute.xlu0 0
  %223 = vperm.xlu0 %222, %v22
  %v224 = vpop.permute.xlu0 %223
  %227 = vset.pattern.permute.xlu0 0
  %228 = vperm.xlu0 %227, %v23
  %v229 = vpop.permute.xlu0 %228
  %v232 = vsel %vm133, %v15, 0
  %v235 = vsel %vm133, %v16, 0
  %v238 = vsel %vm140, %v220, 0
  %240 = vmatprep.subr.mxu0 0.0
  %241 = vmatpush1.msra.mxu0 %v219
  %242 = vmatprep.subr.mxu0 0.0
  %243 = vmatpush1.msra.mxu0 %v238
  %244 = vmatprep.subr.mxu0 0.0
  %245 = vmatpush1.msra.mxu0 0.0
  %246 = vmatprep.subr.mxu0 0.0
  %247 = vmatpush1.msra.mxu0 0.0
  %248 = vmatprep.subr.mxu0 0.0
  %249 = vmatpush1.msra.mxu0 0.0
  %250 = vmatprep.subr.mxu0 0.0
  %251 = vmatpush1.msra.mxu0 0.0
  %252 = vmatprep.subr.mxu0 0.0
  %253 = vmatpush1.msra.mxu0 0.0
  %254 = vmatprep.subr.mxu0 0.0
  %255 = vmatpush1.msra.mxu0 0.0
  %256 = vmatprep.subr.mxu0 0.0
  %257 = vmatpush1.msra.mxu0 0.0
  %258 = vmatprep.subr.mxu0 0.0
  %259 = vmatpush1.msra.mxu0 0.0
  %260 = vmatprep.subr.mxu0 0.0
  %261 = vmatpush1.msra.mxu0 0.0
  %262 = vmatprep.subr.mxu0 0.0
  %263 = vmatpush1.msra.mxu0 0.0
  %264 = vmatprep.subr.mxu0 0.0
  %265 = vmatpush1.msra.mxu0 0.0
  %266 = vmatprep.subr.mxu0 0.0
  %267 = vmatpush1.msra.mxu0 0.0
  %268 = vmatprep.subr.mxu0 0.0
  %269 = vmatpush1.msra.mxu0 0.0
  %270 = vmatprep.subr.mxu0 0.0
  %271 = vmatpush1.msra.mxu0 0.0
  %272 = vmatprep.subr.mxu0 0.0
  %273 = vmatpush1.msra.mxu0 0.0
  %274 = vmatprep.subr.mxu0 0.0
  %275 = vmatpush1.msra.mxu0 0.0
  %276 = vmatprep.subr.mxu0 0.0
  %277 = vmatpush1.msra.mxu0 0.0
  %278 = vmatprep.subr.mxu0 0.0
  %279 = vmatpush1.msra.mxu0 0.0
  %280 = vmatprep.subr.mxu0 0.0
  %281 = vmatpush1.msra.mxu0 0.0
  %282 = vmatprep.subr.mxu0 0.0
  %283 = vmatpush1.msra.mxu0 0.0
  %284 = vmatprep.subr.mxu0 0.0
  %285 = vmatpush1.msra.mxu0 0.0
  %286 = vmatprep.subr.mxu0 0.0
  %287 = vmatpush1.msra.mxu0 0.0
  %288 = vmatprep.subr.mxu0 0.0
  %289 = vmatpush1.msra.mxu0 0.0
  %290 = vmatprep.subr.mxu0 0.0
  %291 = vmatpush1.msra.mxu0 0.0
  %292 = vmatprep.subr.mxu0 0.0
  %293 = vmatpush1.msra.mxu0 0.0
  %294 = vmatprep.subr.mxu0 0.0
  %295 = vmatpush1.msra.mxu0 0.0
  %296 = vmatprep.subr.mxu0 0.0
  %297 = vmatpush1.msra.mxu0 0.0
  %298 = vmatprep.subr.mxu0 0.0
  %299 = vmatpush1.msra.mxu0 0.0
  %300 = vmatprep.subr.mxu0 0.0
  %301 = vmatpush1.msra.mxu0 0.0
  %302 = vmatprep.subr.mxu0 0.0
  %303 = vmatpush1.msra.mxu0 0.0
  %304 = vmatprep.mubr.f32.mxu0 0.0
  %305 = vmatmul.mubr.f32.gmra.mrb[0].mxu0 %v232
  %v306 = vpop.f32.mrb[0].mxu0
  %v307 = vadd.f32 %v224, %v306
  %v308 = vpop.f32.mrb[0].mxu0
  %309 = vmatprep.mubr.f32.mxu0 0.0
  %310 = vmatmul.mubr.f32.gmra.mrb[0].mxu0 %v235
  %v311 = vpop.f32.mrb[0].mxu0
  %v312 = vadd.f32 %v229, %v311
  %v313 = vpop.f32.mrb[0].mxu0
  %314 = vdwg.mxu0
  %v315 = vmax.f32 %v307, 0.0
  %v316 = vmax.f32 %v312, 0.0
  %318 = vset.pattern.permute.xlu0 0
  %319 = vperm.xlu0 %318, %v24
  %v320 = vpop.permute.xlu0 %319
  %v323 = vsel %vm133, %v17, 0
  %v326 = vsel %vm140, %v316, 0
  %328 = vmatprep.subr.mxu0 0.0
  %329 = vmatpush1.msra.mxu0 %v315
  %330 = vmatprep.subr.mxu0 0.0
  %331 = vmatpush1.msra.mxu0 %v326
  %332 = vmatprep.subr.mxu0 0.0
  %333 = vmatpush1.msra.mxu0 0.0
  %334 = vmatprep.subr.mxu0 0.0
  %335 = vmatpush1.msra.mxu0 0.0
  %336 = vmatprep.subr.mxu0 0.0
  %337 = vmatpush1.msra.mxu0 0.0
  %338 = vmatprep.subr.mxu0 0.0
  %339 = vmatpush1.msra.mxu0 0.0
  %340 = vmatprep.subr.mxu0 0.0
  %341 = vmatpush1.msra.mxu0 0.0
  %342 = vmatprep.subr.mxu0 0.0
  %343 = vmatpush1.msra.mxu0 0.0
  %344 = vmatprep.subr.mxu0 0.0
  %345 = vmatpush1.msra.mxu0 0.0
  %346 = vmatprep.subr.mxu0 0.0
  %347 = vmatpush1.msra.mxu0 0.0
  %348 = vmatprep.subr.mxu0 0.0
  %349 = vmatpush1.msra.mxu0 0.0
  %350 = vmatprep.subr.mxu0 0.0
  %351 = vmatpush1.msra.mxu0 0.0
  %352 = vmatprep.subr.mxu0 0.0
  %353 = vmatpush1.msra.mxu0 0.0
  %354 = vmatprep.subr.mxu0 0.0
  %355 = vmatpush1.msra.mxu0 0.0
  %356 = vmatprep.subr.mxu0 0.0
  %357 = vmatpush1.msra.mxu0 0.0
  %358 = vmatprep.subr.mxu0 0.0
  %359 = vmatpush1.msra.mxu0 0.0
  %360 = vmatprep.subr.mxu0 0.0
  %361 = vmatpush1.msra.mxu0 0.0
  %362 = vmatprep.subr.mxu0 0.0
  %363 = vmatpush1.msra.mxu0 0.0
  %364 = vmatprep.subr.mxu0 0.0
  %365 = vmatpush1.msra.mxu0 0.0
  %366 = vmatprep.subr.mxu0 0.0
  %367 = vmatpush1.msra.mxu0 0.0
  %368 = vmatprep.subr.mxu0 0.0
  %369 = vmatpush1.msra.mxu0 0.0
  %370 = vmatprep.subr.mxu0 0.0
  %371 = vmatpush1.msra.mxu0 0.0
  %372 = vmatprep.subr.mxu0 0.0
  %373 = vmatpush1.msra.mxu0 0.0
  %374 = vmatprep.subr.mxu0 0.0
  %375 = vmatpush1.msra.mxu0 0.0
  %376 = vmatprep.subr.mxu0 0.0
  %377 = vmatpush1.msra.mxu0 0.0
  %378 = vmatprep.subr.mxu0 0.0
  %379 = vmatpush1.msra.mxu0 0.0
  %380 = vmatprep.subr.mxu0 0.0
  %381 = vmatpush1.msra.mxu0 0.0
  %382 = vmatprep.subr.mxu0 0.0
  %383 = vmatpush1.msra.mxu0 0.0
  %384 = vmatprep.subr.mxu0 0.0
  %385 = vmatpush1.msra.mxu0 0.0
  %386 = vmatprep.subr.mxu0 0.0
  %387 = vmatpush1.msra.mxu0 0.0
  %388 = vmatprep.subr.mxu0 0.0
  %389 = vmatpush1.msra.mxu0 0.0
  %390 = vmatprep.subr.mxu0 0.0
  %391 = vmatpush1.msra.mxu0 0.0
  %392 = vmatprep.mubr.f32.mxu0 0.0
  %393 = vmatmul.mubr.f32.gmra.mrb[0].mxu0 %v323
  %v394 = vpop.f32.mrb[0].mxu0
  %v395 = vadd.f32 %v320, %v394
  %v396 = vpop.f32.mrb[0].mxu0
  %397 = vdwg.mxu0
  %398 = vst [vmem:[%s2] sm:$0x1] %v395
  // Predicated region
  $region10: #{value_network_forward.1} parent=0 // pred_check
    _
  $region11: #{value_network_forward.1} parent=0 // pred_check_branch
    %400 = sbr.rel (0) target = $region13
  $region12: #{value_network_forward.1} parent=0 // pred_region
    _
  $region13: #{value_network_forward.1} parent=0 // pred_fallthru
    _
  // Predicated region
  $region14: #{value_network_forward.1} parent=0 // pred_check
    _
  $region15: #{value_network_forward.1} parent=0 // pred_check_branch
    %402 = sbr.rel (0) target = $region17
  $region16: #{value_network_forward.1} parent=0 // pred_region
    _
  $region17: #{value_network_forward.1} parent=0 // pred_fallthru
    _

</llo_original>
